<compile_context>
chip_gen: v5e
topology: v5e:2x2
jax: 0.10.0
libtpu: 0.0.40
codegen_flags: <defaults>
</compile_context>

<pallas_src>
import functools
import math

import jax
import jax.numpy as jnp
from jax.experimental import pallas as pl
from jax.experimental.pallas import tpu as pltpu

_LOG_SQRT_2PI = 0.5 * math.log(2.0 * math.pi)
_SCALE_LOWER_BOUND = 1e-6  # LowerBound.apply(sds, 1e-6)


def _meanfield_kernel(loc_ref, sds_ref, low_ref, up_ref, eps_ref,
                      samples_ref, logq_ref, locscale_ref):
    loc = loc_ref[...]                                          # [P, 1]
    scale = jnp.maximum(sds_ref[...], _SCALE_LOWER_BOUND)       # LowerBound clamp
    a = low_ref[...]
    b = up_ref[...]
    eps = eps_ref[...]                                          # [P, Npad] std normal

    # rsample of RescaledLogitNormal:
    #   x ~ Normal(loc, scale);  y = a + (b - a) * sigmoid(x)
    x = loc + scale * eps                                       # [P, Npad]
    samples_ref[...] = a + (b - a) * jax.nn.sigmoid(x)

    # log_prob(y) = Normal(loc, scale).log_prob(x) - log(s) - log(1-s) - log(b-a)
    #             = -0.5*eps^2 - log(scale) - log(sqrt(2pi))
    #               + x + 2*softplus(-x) - log(b-a)
    # (z = (x - loc)/scale == eps;  -log_sigmoid(x)-log_sigmoid(-x) = x + 2*softplus(-x);
    #  softplus form kept for numerical safety at large |x|.)
    const = -(jnp.log(scale) + jnp.log(b - a)) - _LOG_SQRT_2PI  # [P, 1], hoisted
    logp = const + x + 2.0 * jax.nn.softplus(-x) - 0.5 * (eps * eps)   # [P, Npad]

    # log_q_theta: sum over the parameter (sublane) axis -> lane-dense [1, Npad].
    logq_ref[...] = jnp.sum(logp, axis=0, keepdims=True)

    # (loc, clamped scale) slab written with one store.
    locscale_ref[...] = jnp.concatenate([loc, scale], axis=-1)


@functools.partial(jax.jit, static_argnames=("param_names", "n_samples", "n_pad"))
def _forward_jit(loc, sd, low, up, key, *, param_names, n_samples, n_pad):
    P = loc.shape[0]
    f32 = jnp.float32

    # Standard-normal noise, generated inside the same jit (single dispatch).
    eps = jax.random.normal(key, (P, n_pad), dtype=f32)

    param_spec = pl.BlockSpec((P, 1), lambda i: (0, 0))
    samples_pn, logq_row, loc_scale = pl.pallas_call(
        _meanfield_kernel,
        grid=(1,),
        in_specs=[param_spec, param_spec, param_spec, param_spec,
                  pl.BlockSpec((P, n_pad), lambda i: (0, 0))],
        out_specs=[
            pl.BlockSpec((P, n_pad), lambda i: (0, 0)),   # samples (params x lanes)
            pl.BlockSpec((1, n_pad), lambda i: (0, 0)),   # log_q (lane-dense)
            pl.BlockSpec((P, 2), lambda i: (0, 0)),       # (loc, clamped scale)
        ],
        out_shape=[
            jax.ShapeDtypeStruct((P, n_pad), f32),
            jax.ShapeDtypeStruct((1, n_pad), f32),
            jax.ShapeDtypeStruct((P, 2), f32),
        ],
        compiler_params=pltpu.CompilerParams(dimension_semantics=("arbitrary",)),
    )(loc, sd, low, up, eps)

    # Slice padded lanes back to the requested N (inside the jit, fused).
    samples_pn = samples_pn[:, :n_samples]                  # [P, N]
    log_q_theta = logq_row[0, :n_samples]                   # [N]
    samples = samples_pn.T                                  # [N, P], torch layout

    # Per-key views, all built inside the single jitted computation.
    dict_out = {k: samples_pn[i] for i, k in enumerate(param_names)}
    dict_parent_loc_scale = {k: loc_scale[i:i + 1] for i, k in enumerate(param_names)}
    return dict_out, samples, log_q_theta, dict_parent_loc_scale


def mean_field_forward(param_names, means, sds, lowers, uppers, key, N=10):
    """Pure-JAX wrapper mirroring MeanField.forward (RescaledLogitNormal branch).

    Note: requires uppers > lowers elementwise (RescaledLogitNormal support);
    validate once at model-setup time, not per-launch.
    """
    P = means.shape[0]
    f32 = jnp.float32
    n_pad = max(128, ((N + 127) // 128) * 128)     # lane-dense block (full vregs)

    loc = means.reshape(P, 1).astype(f32)          # params on the sublane axis
    sd = sds.reshape(P, 1).astype(f32)
    low = lowers.reshape(P, 1).astype(f32)
    up = uppers.reshape(P, 1).astype(f32)

    return _forward_jit(loc, sd, low, up, key,
                        param_names=tuple(param_names),
                        n_samples=int(N), n_pad=int(n_pad))


if __name__ == "__main__":
    # Deterministic synthetic "prior details": (mean, sd, lower, upper) per param.
    PARAM_NAMES = [f"theta_{i}" for i in range(8)]
    PRIOR_DIST_DETAILS_DICT = {
        name: (0.1 * (i + 1),        # mean (parent / logit space)
               0.05 * (i + 1),       # sd
               0.0,                  # lower bound
               1.0 + 0.5 * i)        # upper bound
        for i, name in enumerate(PARAM_NAMES)
    }

    means = jnp.array([PRIOR_DIST_DETAILS_DICT[k][0] for k in PARAM_NAMES], jnp.float32)
    sds = jnp.array([PRIOR_DIST_DETAILS_DICT[k][1] for k in PARAM_NAMES], jnp.float32)
    lowers = jnp.array([PRIOR_DIST_DETAILS_DICT[k][2] for k in PARAM_NAMES], jnp.float32)
    uppers = jnp.array([PRIOR_DIST_DETAILS_DICT[k][3] for k in PARAM_NAMES], jnp.float32)

    key = jax.random.PRNGKey(0)
    N = 10

    dict_out, samples, log_q_theta, dict_parent_loc_scale = mean_field_forward(
        PARAM_NAMES, means, sds, lowers, uppers, key, N=N)

    jax.block_until_ready(samples)
    jax.block_until_ready(log_q_theta)

    assert samples.shape == (N, len(PARAM_NAMES))
    assert log_q_theta.shape == (N,)
    assert dict_out[PARAM_NAMES[0]].shape == (N,)
    assert dict_parent_loc_scale[PARAM_NAMES[0]].shape == (1, 2)
    assert bool(jnp.all(jnp.isfinite(samples))) and bool(jnp.all(jnp.isfinite(log_q_theta)))
    # samples must respect the [lower, upper] support
    assert bool(jnp.all(samples >= lowers[None, :])) and bool(jnp.all(samples <= uppers[None, :]))

    # Cross-check log_q against a pure-JAX reference built from the same noise.
    eps_ref = jax.random.normal(key, (len(PARAM_NAMES), 128), jnp.float32)[:, :N]
    scale_ref = jnp.maximum(sds, 1e-6)
    x_ref = means[:, None] + scale_ref[:, None] * eps_ref
    logp_ref = (-0.5 * eps_ref**2 - jnp.log(scale_ref)[:, None]
                - 0.5 * math.log(2 * math.pi)
                - jax.nn.log_sigmoid(x_ref) - jax.nn.log_sigmoid(-x_ref)
                - jnp.log(uppers - lowers)[:, None])
    assert bool(jnp.allclose(log_q_theta, jnp.sum(logp_ref, axis=0), rtol=1e-4, atol=1e-4))

    print("KERNEL_OK")
</pallas_src>

<mosaic_0001>
module attributes {stable_mosaic.version = 11 : i64} {
  func.func @_meanfield_kernel(%arg0: i32, %arg1: memref<8x1xf32, #tpu.memory_space<vmem>>, %arg2: memref<8x1xf32, #tpu.memory_space<vmem>>, %arg3: memref<8x1xf32, #tpu.memory_space<vmem>>, %arg4: memref<8x1xf32, #tpu.memory_space<vmem>>, %arg5: memref<8x128xf32, #tpu.memory_space<vmem>>, %arg6: memref<8x128xf32, #tpu.memory_space<vmem>>, %arg7: memref<1x128xf32, #tpu.memory_space<vmem>>, %arg8: memref<8x2xf32, #tpu.memory_space<vmem>>) attributes {dimension_semantics = [#tpu.dimension_semantics<arbitrary>], iteration_bounds = array<i64: 1>, scalar_prefetch = 0 : i64, scratch_operands = 0 : i64, tpu.core_type = #tpu.core_type<tc>, window_params = [{pipeline_mode = #tpu.pipeline_mode<synchronous>, transform_indices = @transform_0, window_bounds = array<i64: 8, 1>}, {pipeline_mode = #tpu.pipeline_mode<synchronous>, transform_indices = @transform_1, window_bounds = array<i64: 8, 1>}, {pipeline_mode = #tpu.pipeline_mode<synchronous>, transform_indices = @transform_2, window_bounds = array<i64: 8, 1>}, {pipeline_mode = #tpu.pipeline_mode<synchronous>, transform_indices = @transform_3, window_bounds = array<i64: 8, 1>}, {pipeline_mode = #tpu.pipeline_mode<synchronous>, transform_indices = @transform_4, window_bounds = array<i64: 8, 128>}, {pipeline_mode = #tpu.pipeline_mode<synchronous>, transform_indices = @transform_5, window_bounds = array<i64: 8, 128>}, {pipeline_mode = #tpu.pipeline_mode<synchronous>, transform_indices = @transform_6, window_bounds = array<i64: 1, 128>}, {pipeline_mode = #tpu.pipeline_mode<synchronous>, transform_indices = @transform_7, window_bounds = array<i64: 8, 2>}]} {
    %c0 = arith.constant 0 : index
    %c0_0 = arith.constant 0 : index
    %0 = vector.load %arg1[%c0, %c0_0] : memref<8x1xf32, #tpu.memory_space<vmem>>, vector<8x1xf32>
    %c0_1 = arith.constant 0 : index
    %c0_2 = arith.constant 0 : index
    %1 = vector.load %arg2[%c0_1, %c0_2] : memref<8x1xf32, #tpu.memory_space<vmem>>, vector<8x1xf32>
    %cst = arith.constant 9.99999997E-7 : f32
    %2 = vector.broadcast %cst : f32 to vector<8x1xf32>
    %3 = arith.maximumf %1, %2 : vector<8x1xf32>
    %c0_3 = arith.constant 0 : index
    %c0_4 = arith.constant 0 : index
    %4 = vector.load %arg3[%c0_3, %c0_4] : memref<8x1xf32, #tpu.memory_space<vmem>>, vector<8x1xf32>
    %c0_5 = arith.constant 0 : index
    %c0_6 = arith.constant 0 : index
    %5 = vector.load %arg4[%c0_5, %c0_6] : memref<8x1xf32, #tpu.memory_space<vmem>>, vector<8x1xf32>
    %c0_7 = arith.constant 0 : index
    %c0_8 = arith.constant 0 : index
    %6 = vector.load %arg5[%c0_7, %c0_8] : memref<8x128xf32, #tpu.memory_space<vmem>>, vector<8x128xf32>
    %7 = vector.broadcast %3 : vector<8x1xf32> to vector<8x128xf32>
    %8 = arith.mulf %7, %6 : vector<8x128xf32>
    %9 = vector.broadcast %0 : vector<8x1xf32> to vector<8x128xf32>
    %10 = arith.addf %9, %8 : vector<8x128xf32>
    %11 = arith.subf %5, %4 : vector<8x1xf32>
    %12 = arith.negf %10 : vector<8x128xf32>
    %13 = math.exp %12 : vector<8x128xf32>
    %cst_9 = arith.constant 1.000000e+00 : f32
    %14 = vector.broadcast %cst_9 : f32 to vector<8x128xf32>
    %15 = arith.addf %14, %13 : vector<8x128xf32>
    %16 = arith.divf %14, %15 : vector<8x128xf32>
    %17 = vector.broadcast %11 : vector<8x1xf32> to vector<8x128xf32>
    %18 = arith.mulf %17, %16 : vector<8x128xf32>
    %19 = vector.broadcast %4 : vector<8x1xf32> to vector<8x128xf32>
    %20 = arith.addf %19, %18 : vector<8x128xf32>
    %c0_10 = arith.constant 0 : index
    %c0_11 = arith.constant 0 : index
    %21 = vector.load %arg6[%c0_10, %c0_11] : memref<8x128xf32, #tpu.memory_space<vmem>>, vector<8x128xf32>
    tpu.vector_store %arg6[%c0_10, %c0_11], %20 {strides = array<i32>} : memref<8x128xf32, #tpu.memory_space<vmem>>, vector<8x128xf32>,
    %22 = math.log %3 : vector<8x1xf32>
    %23 = arith.subf %5, %4 : vector<8x1xf32>
    %24 = math.log %23 : vector<8x1xf32>
    %25 = arith.addf %22, %24 : vector<8x1xf32>
    %cst_12 = arith.constant 0.000000e+00 : f32
    %26 = vector.broadcast %cst_12 : f32 to vector<8x1xf32>
    %27 = arith.subf %26, %25 : vector<8x1xf32>
    %cst_13 = arith.constant 0.918938517 : f32
    %28 = vector.broadcast %cst_13 : f32 to vector<8x1xf32>
    %29 = arith.subf %27, %28 : vector<8x1xf32>
    %30 = vector.broadcast %29 : vector<8x1xf32> to vector<8x128xf32>
    %31 = arith.addf %30, %10 : vector<8x128xf32>
    %cst_14 = arith.constant 0.000000e+00 : f32
    %32 = vector.broadcast %cst_14 : f32 to vector<8x128xf32>
    %33 = arith.subf %32, %10 : vector<8x128xf32>
    %cst_15 = arith.constant 0.000000e+00 : f32
    %34 = vector.broadcast %cst_15 : f32 to vector<8x128xf32>
    %35 = arith.maximumf %33, %34 : vector<8x128xf32>
    %36 = vector.broadcast %cst_15 : f32 to vector<8x128xf32>
    %37 = arith.subf %33, %36 : vector<8x128xf32>
    %38 = arith.cmpf one, %37, %37 : vector<8x128xf32>
    %39 = vector.broadcast %cst_15 : f32 to vector<8x128xf32>
    %40 = arith.addf %33, %39 : vector<8x128xf32>
    %41 = math.absf %37 : vector<8x128xf32>
    %cst_16 = arith.constant 0.000000e+00 : f32
    %42 = vector.broadcast %cst_16 : f32 to vector<8x128xf32>
    %43 = arith.subf %42, %41 : vector<8x128xf32>
    %44 = math.exp %43 : vector<8x128xf32>
    %45 = math.log1p %44 : vector<8x128xf32>
    %46 = arith.addf %35, %45 : vector<8x128xf32>
    %47 = arith.select %38, %40, %46 : vector<8x128xi1>, vector<8x128xf32>
    %cst_17 = arith.constant 2.000000e+00 : f32
    %48 = vector.broadcast %cst_17 : f32 to vector<8x128xf32>
    %49 = arith.mulf %48, %47 : vector<8x128xf32>
    %50 = arith.addf %31, %49 : vector<8x128xf32>
    %51 = arith.mulf %6, %6 : vector<8x128xf32>
    %cst_18 = arith.constant 5.000000e-01 : f32
    %52 = vector.broadcast %cst_18 : f32 to vector<8x128xf32>
    %53 = arith.mulf %52, %51 : vector<8x128xf32>
    %54 = arith.subf %50, %53 : vector<8x128xf32>
    %cst_19 = arith.constant dense<0.000000e+00> : vector<128xf32>
    %55 = vector.multi_reduction <add>, %54, %cst_19 [0] : vector<8x128xf32> to vector<128xf32>
    %56 = vector.shape_cast %55 : vector<128xf32> to vector<1x128xf32>
    %c0_20 = arith.constant 0 : index
    %c0_21 = arith.constant 0 : index
    %57 = vector.load %arg7[%c0_20, %c0_21] : memref<1x128xf32, #tpu.memory_space<vmem>>, vector<1x128xf32>
    tpu.vector_store %arg7[%c0_20, %c0_21], %56 {strides = array<i32>} : memref<1x128xf32, #tpu.memory_space<vmem>>, vector<1x128xf32>,
    %58 = tpu.concatenate %0, %3 in 1 : vector<8x1xf32>, vector<8x1xf32> -> vector<8x2xf32>
    %c0_22 = arith.constant 0 : index
    %c0_23 = arith.constant 0 : index
    %59 = vector.load %arg8[%c0_22, %c0_23] : memref<8x2xf32, #tpu.memory_space<vmem>>, vector<8x2xf32>
    tpu.vector_store %arg8[%c0_22, %c0_23], %58 {strides = array<i32>} : memref<8x2xf32, #tpu.memory_space<vmem>>, vector<8x2xf32>,
    return
  }
  func.func @transform_0(%arg0: i32) -> (i32, i32) {
    %c0_i32 = arith.constant 0 : i32
    %c0_i32_0 = arith.constant 0 : i32
    %c0_i32_1 = arith.constant 0 : i32
    return %c0_i32, %c0_i32_0 : i32, i32
  }
  func.func @transform_1(%arg0: i32) -> (i32, i32) {
    %c0_i32 = arith.constant 0 : i32
    %c0_i32_0 = arith.constant 0 : i32
    %c0_i32_1 = arith.constant 0 : i32
    return %c0_i32, %c0_i32_0 : i32, i32
  }
  func.func @transform_2(%arg0: i32) -> (i32, i32) {
    %c0_i32 = arith.constant 0 : i32
    %c0_i32_0 = arith.constant 0 : i32
    %c0_i32_1 = arith.constant 0 : i32
    return %c0_i32, %c0_i32_0 : i32, i32
  }
  func.func @transform_3(%arg0: i32) -> (i32, i32) {
    %c0_i32 = arith.constant 0 : i32
    %c0_i32_0 = arith.constant 0 : i32
    %c0_i32_1 = arith.constant 0 : i32
    return %c0_i32, %c0_i32_0 : i32, i32
  }
  func.func @transform_4(%arg0: i32) -> (i32, i32) {
    %c0_i32 = arith.constant 0 : i32
    %c0_i32_0 = arith.constant 0 : i32
    %c0_i32_1 = arith.constant 0 : i32
    return %c0_i32, %c0_i32_0 : i32, i32
  }
  func.func @transform_5(%arg0: i32) -> (i32, i32) {
    %c0_i32 = arith.constant 0 : i32
    %c0_i32_0 = arith.constant 0 : i32
    %c0_i32_1 = arith.constant 0 : i32
    return %c0_i32, %c0_i32_0 : i32, i32
  }
  func.func @transform_6(%arg0: i32) -> (i32, i32) {
    %c0_i32 = arith.constant 0 : i32
    %c0_i32_0 = arith.constant 0 : i32
    %c0_i32_1 = arith.constant 0 : i32
    return %c0_i32, %c0_i32_0 : i32, i32
  }
  func.func @transform_7(%arg0: i32) -> (i32, i32) {
    %c0_i32 = arith.constant 0 : i32
    %c0_i32_0 = arith.constant 0 : i32
    %c0_i32_1 = arith.constant 0 : i32
    return %c0_i32, %c0_i32_0 : i32, i32
  }
}

</mosaic_0001>

<llo_original>
// kernel: _forward_jit.1
$region0: #{_forward_jit.1}
  #allocation0 [shape = 'u32[]', space=smem, size = 0x4, offset = 0x4, fixed_abs, tag = 'smem constant byte address 0x4 - core index']
  #allocation1 [shape = 'u32[72,128]{1,0:T(1,128)}', space=vmem, size = 0x9000, scoped, tag = 'internal scratch']
  %s0 = inlined_call_operand.vmem [shape: f32[8,1], index: 0, kind: input, shape index: {}]
  %s1 = inlined_call_operand.vmem [shape: f32[8,1], index: 1, kind: input, shape index: {}]
  %s2 = inlined_call_operand.vmem [shape: f32[8,1], index: 2, kind: input, shape index: {}]
  %s3 = inlined_call_operand.vmem [shape: f32[8,1], index: 3, kind: input, shape index: {}]
  %s4 = inlined_call_operand.vmem [shape: f32[8,128], index: 4, kind: input, shape index: {}]
  %s5 = inlined_call_operand.vmem [shape: f32[8,128], index: 5, kind: output, shape index: {0}]
  %s6 = inlined_call_operand.vmem [shape: f32[1,128], index: 6, kind: output, shape index: {1}]
  %s7 = inlined_call_operand.vmem [shape: f32[8,2], index: 7, kind: output, shape index: {2}]
  %8 = xla_tuple %s5, %s6, %s7
  %s9 = sld [smem:[#allocation0]]
  $region46: #{_forward_jit.1} parent=0
    _
  %s11 = ssub.s32 1, %s9
  %s12 = scalar_select 0, %s11, %s9
  // Predicated region
  $region2: #{_forward_jit.1} parent=0 // pred_check
    _
  $region3: #{_forward_jit.1} parent=0 // pred_check_branch
    %14 = sbr.rel (0) target = $region5
  $region4: #{_forward_jit.1} parent=0 // pred_region
    _
  $region5: #{_forward_jit.1} parent=0 // pred_fallthru
    _
  // Predicated region
  $region6: #{_forward_jit.1} parent=0 // pred_check
    _
  $region7: #{_forward_jit.1} parent=0 // pred_check_branch
    %16 = sbr.rel (0) target = $region9
  $region8: #{_forward_jit.1} parent=0 // pred_region
    _
  $region9: #{_forward_jit.1} parent=0 // pred_fallthru
    _
  // Predicated region
  $region10: #{_forward_jit.1} parent=0 // pred_check
    _
  $region11: #{_forward_jit.1} parent=0 // pred_check_branch
    %18 = sbr.rel (0) target = $region13
  $region12: #{_forward_jit.1} parent=0 // pred_region
    _
  $region13: #{_forward_jit.1} parent=0 // pred_fallthru
    _
  // Predicated region
  $region14: #{_forward_jit.1} parent=0 // pred_check
    _
  $region15: #{_forward_jit.1} parent=0 // pred_check_branch
    %20 = sbr.rel (0) target = $region17
  $region16: #{_forward_jit.1} parent=0 // pred_region
    _
  $region17: #{_forward_jit.1} parent=0 // pred_fallthru
    _
  // Predicated region
  $region18: #{_forward_jit.1} parent=0 // pred_check
    _
  $region19: #{_forward_jit.1} parent=0 // pred_check_branch
    %22 = sbr.rel (0) target = $region21
  $region20: #{_forward_jit.1} parent=0 // pred_region
    _
  $region21: #{_forward_jit.1} parent=0 // pred_fallthru
    _
  %v23 = vld [vmem:[%s0] sm:$0xff]
  %v24 = vld [vmem:[%s1] sm:$0xff]
  %v25 = vmax.f32 %v24, 1e-06
  %v26 = vld [vmem:[%s2] sm:$0xff]
  %v27 = vld [vmem:[%s3] sm:$0xff]
  %v28 = vld [vmem:[%s4] sm:$0xff]
  %30 = vset.pattern.permute.xlu0 0
  %31 = vperm.xlu0 %30, %v25
  %v32 = vpop.permute.xlu0 %31
  %v34 = vmul.f32 %v32, %v28
  %36 = vset.pattern.permute.xlu0 0
  %37 = vperm.xlu0 %36, %v23
  %v38 = vpop.permute.xlu0 %37
  %v40 = vadd.f32 %v38, %v34
  %v41 = vsub.f32 %v27, %v26
  %v42 = vxor.u32 %v40, 2147483648
  %v43 = vmul.f32 %v42, 1.442695
  %v44 = vpow.pop %v43
  %v45 = vadd.f32 %v44, 1.0
  %v46 = vrcp.pop %v45
  %v47 = vmul.f32 %v45, %v46
  %v48 = vsub.f32 1.0, %v47
  %v49 = vmul.f32 %v46, %v48
  %v50 = vadd.f32 %v46, %v49
  %vm51 = vweird.f32 %v45
  %vm52 = vweird.f32 %v46
  %vm53 = vmor %vm51, %vm52
  %v54 = vsel %vm53, %v46, %v50
  %v55 = vand.u32 2147483647, %v45
  %vm56 = vcmp.eq.f32.partialorder %v55, 8.507059e+37
  %v57 = vand.u32 %v45, 2147483648
  %v58 = vor.u32 1.1754944e-38, %v57
  %v59 = vsel %vm56, %v58, %v54
  %v60 = vmul.f32 1.0, %v59
  %62 = vset.pattern.permute.xlu0 0
  %63 = vperm.xlu0 %62, %v41
  %v64 = vpop.permute.xlu0 %63
  %v66 = vmul.f32 %v64, %v60
  %68 = vset.pattern.permute.xlu0 0
  %69 = vperm.xlu0 %68, %v26
  %v70 = vpop.permute.xlu0 %69
  %v72 = vadd.f32 %v70, %v66
  %73 = vst [vmem:[%s5] sm:$0xff] %v72
  %v74 = vlog2.pop %v25
  %v75 = vmul.f32 %v74, 0.6931472
  %v76 = vlog2.pop %v41
  %v77 = vmul.f32 %v76, 0.6931472
  %v78 = vadd.f32 %v75, %v77
  %v79 = vsub.f32 0.0, %v78
  %v80 = vsub.f32 %v79, 0.9189385
  %82 = vset.pattern.permute.xlu0 0
  %83 = vperm.xlu0 %82, %v80
  %v84 = vpop.permute.xlu0 %83
  %v86 = vadd.f32 %v84, %v40
  %v87 = vsub.f32 0.0, %v40
  %v88 = vmax.f32 %v87, 0.0
  %vm89 = vcmp.ne.f32.partialorder %v87, %v87
  %v90 = vadd.f32 %v87, 0.0
  %v91 = vand.u32 2147483647, %v87
  %v92 = vsub.f32 0.0, %v91
  %v93 = vmul.f32 %v92, 1.442695
  %v94 = vpow.pop %v93
  %v95 = vadd.f32 %v94, 1.0
  %v96 = vlog2.pop %v95
  %v97 = vmul.f32 %v96, 0.6931472
  %v98 = vmul.f32 -0.5, %v94
  %v99 = vadd.f32 %v98, 1.0
  %v100 = vmul.f32 %v99, %v94
  %v101 = vand.u32 2147483647, %v94
  %vm102 = vcmp.lt.f32.partialorder %v101, 0.0004427343
  %v103 = vsel %vm102, %v100, %v97
  %v104 = vadd.f32 %v88, %v103
  %v105 = vsel %vm89, %v90, %v104
  %v106 = vmul.f32 %v105, 2.0
  %v107 = vadd.f32 %v86, %v106
  %v108 = vmul.f32 %v28, %v28
  %v109 = vmul.f32 %v108, 0.5
  %v110 = vsub.f32 %v107, %v109
  %v111 = vrot.slane %v110, 4
  %v112 = vadd.f32 %v110, %v111
  %v113 = vrot.slane %v112, 2
  %v114 = vadd.f32 %v112, %v113
  %v115 = vrot.slane %v114, 1
  %v116 = vadd.f32 %v114, %v115
  %117 = vst [vmem:[%s6] sm:$0x1] %v116
  %118 = vrot.lane.b32.xlu0 %v25, 1
  %v119 = vpop.permute.xlu0 %118
  %vm121 = vcmask 7168
  %v122 = vsel %vm121, %v23, %v119
  %vm123 = vcmask 15360
  %124 = vst.msk [vmem:[%s7] sm:$0xff] %vm123, %v122
  // Predicated region
  $region22: #{_forward_jit.1} parent=0 // pred_check
    _
  $region23: #{_forward_jit.1} parent=0 // pred_check_branch
    %126 = sbr.rel (0) target = $region25
  $region24: #{_forward_jit.1} parent=0 // pred_region
    _
  $region25: #{_forward_jit.1} parent=0 // pred_fallthru
    _
  // Predicated region
  $region26: #{_forward_jit.1} parent=0 // pred_check
    _
  $region27: #{_forward_jit.1} parent=0 // pred_check_branch
    %128 = sbr.rel (0) target = $region29
  $region28: #{_forward_jit.1} parent=0 // pred_region
    _
  $region29: #{_forward_jit.1} parent=0 // pred_fallthru
    _
  // Predicated region
  $region30: #{_forward_jit.1} parent=0 // pred_check
    _
  $region31: #{_forward_jit.1} parent=0 // pred_check_branch
    %130 = sbr.rel (0) target = $region33
  $region32: #{_forward_jit.1} parent=0 // pred_region
    _
  $region33: #{_forward_jit.1} parent=0 // pred_fallthru
    _
  // Predicated region
  $region34: #{_forward_jit.1} parent=0 // pred_check
    _
  $region35: #{_forward_jit.1} parent=0 // pred_check_branch
    %132 = sbr.rel (0) target = $region37
  $region36: #{_forward_jit.1} parent=0 // pred_region
    _
  $region37: #{_forward_jit.1} parent=0 // pred_fallthru
    _
  // Predicated region
  $region38: #{_forward_jit.1} parent=0 // pred_check
    _
  $region39: #{_forward_jit.1} parent=0 // pred_check_branch
    %134 = sbr.rel (0) target = $region41
  $region40: #{_forward_jit.1} parent=0 // pred_region
    _
  $region41: #{_forward_jit.1} parent=0 // pred_fallthru
    _
  // Predicated region
  $region42: #{_forward_jit.1} parent=0 // pred_check
    _
  $region43: #{_forward_jit.1} parent=0 // pred_check_branch
    %136 = sbr.rel (0) target = $region45
  $region44: #{_forward_jit.1} parent=0 // pred_region
    _
  $region45: #{_forward_jit.1} parent=0 // pred_fallthru
    _

</llo_original>
